<compile_context>
chip_gen: v7x
topology: tpu7x:2x2x1
jax: 0.10.0
libtpu: 0.0.40
codegen_flags: <defaults>
</compile_context>

<pallas_src>
import functools

import jax
import jax.numpy as jnp
from jax.experimental import pallas as pl
from jax.experimental.pallas import tpu as pltpu

_EPS = 1e-6                          # nn.PairwiseDistance default eps
_ROW_ALIGN = 32                      # sublane alignment safe for f32 / bf16 / int8 packing
_MAX_BLOCK_BYTES = 3 * 1024 * 1024   # per input per pipeline buffer (x4 ≈ 12 MiB, v7x-safe)


def _round_up(x, m):
    return (x + m - 1) // m * m


def _num_tensorcores():
    """2 only on chips with >1 TensorCore per device (v7x-style megacore), else 1."""
    try:
        dev = jax.devices()[0]
        cores = getattr(dev, "num_cores", None)
        if isinstance(cores, int) and cores >= 2:
            return 2
        kind = str(getattr(dev, "device_kind", "")).lower()
        if "v7" in kind or "tpu7" in kind:
            return 2
    except Exception:
        pass
    return 1


def _recon_loss_kernel(x_ref, y_ref, out_ref, acc_ref, *, channels, n_rows,
                       tiles_per_split):
    """Blocks are dense (tile_r, 128*channels) slabs of the flattened inputs."""
    tile_r, width = x_ref.shape
    p = pl.program_id(0)             # core-split index
    i = pl.program_id(1)             # tile index within this split

    @pl.when(i == 0)
    def _():
        acc_ref[...] = jnp.zeros_like(acc_ref)

    # Native-dtype DMA; cast to f32 after the load so eps-add / squaring stay full precision.
    d = x_ref[...].astype(jnp.float32) - y_ref[...].astype(jnp.float32) + _EPS
    sq = d * d                                                        # (tile_r, width)

    # 0/1 selection matrix: column g sums the `channels` consecutive (interleaved)
    # lanes of group g:  sel[w, g] = 1  iff  g*C <= w < (g+1)*C.
    # (Built with multiplies/compares only — no vector integer division.)
    w_idx = jax.lax.broadcasted_iota(jnp.int32, (width, 128), 0)
    g_idx = jax.lax.broadcasted_iota(jnp.int32, (width, 128), 1)
    g_start = g_idx * channels
    sel = ((w_idx >= g_start) & (w_idx < g_start + channels)).astype(jnp.float32)

    # Per-row squared L2 for 128 rows per slab-row, via the otherwise-idle MXU.
    row_sq = jnp.dot(sq, sel, preferred_element_type=jnp.float32)     # (tile_r, 128)
    dist = jnp.sqrt(row_sq)

    # Mask rows past n_rows (zero-padding rows and clamped over-range tiles). The
    # UNclamped tile index guarantees duplicate tiles contribute exactly zero.
    tile_idx = p * tiles_per_split + i
    r_idx = jax.lax.broadcasted_iota(jnp.int32, (tile_r, 128), 0)
    c_idx = jax.lax.broadcasted_iota(jnp.int32, (tile_r, 128), 1)
    gidx = (tile_idx * tile_r + r_idx) * 128 + c_idx
    dist = jnp.where(gidx < n_rows, dist, 0.0)

    acc_ref[...] += jnp.sum(dist, axis=0, keepdims=True)              # (1, 128) partials

    # Single cross-lane reduce + tiny store, only on this split's last tile.
    @pl.when(i == pl.num_programs(1) - 1)
    def _():
        out_ref[...] = jnp.full(out_ref.shape, jnp.sum(acc_ref[...]), jnp.float32)


def recon_loss(pred, gt, *, max_block_rows=None, num_splits=None):
    """pred, gt: (B, V, C) arrays -> scalar float32 loss (PairwiseDistance p=2, flat mean)."""
    B, V, C = pred.shape
    assert gt.shape == pred.shape
    N = B * V
    total = N * C
    width = 128 * C                              # dense slab row width (multiple of 128 & C)
    itemsize = jnp.dtype(pred.dtype).itemsize

    if max_block_rows is None:
        max_block_rows = _MAX_BLOCK_BYTES // (width * itemsize)
    max_block_rows = max(_ROW_ALIGN, max_block_rows // _ROW_ALIGN * _ROW_ALIGN)

    rows = _round_up(pl.cdiv(total, width), _ROW_ALIGN)
    if rows <= max_block_rows:                   # single-block fast path (typical case)
        tile_r, n_tiles = rows, 1
    else:
        tile_r = max_block_rows
        n_tiles = pl.cdiv(rows, tile_r)
        rows = n_tiles * tile_r

    if num_splits is None:
        num_splits = _num_tensorcores()
    num_splits = max(1, min(num_splits, n_tiles))
    tiles_per_split = pl.cdiv(n_tiles, num_splits)

    # Flatten + zero-pad into the dense (rows, width) slab. This is a contiguous
    # row-major view (NO transpose); padded elements land in rows whose group
    # indices are >= N and are masked inside the kernel.
    x = pred.reshape(-1)
    y = gt.reshape(-1)
    pad = rows * width - total
    if pad:
        x = jnp.pad(x, (0, pad))
        y = jnp.pad(y, (0, pad))
    x = x.reshape(rows, width)
    y = y.reshape(rows, width)

    def in_map(p, i):
        # Clamp over-range tiles (from split rounding) onto the last real tile; Pallas
        # skips the re-fetch and the kernel masks them to zero via the unclamped index.
        return (jnp.minimum(p * tiles_per_split + i, n_tiles - 1), 0)

    kernel = functools.partial(_recon_loss_kernel, channels=C, n_rows=N,
                               tiles_per_split=tiles_per_split)

    cost = pl.CostEstimate(
        flops=3 * rows * width + 2 * rows * width * 128,   # elementwise + selection matmul
        transcendentals=rows * 128,                        # one sqrt per (padded) row
        bytes_accessed=2 * rows * width * itemsize + num_splits * 128 * 4,
    )

    out = pl.pallas_call(
        kernel,
        out_shape=jax.ShapeDtypeStruct((num_splits, 1, 128), jnp.float32),
        grid_spec=pltpu.PrefetchScalarGridSpec(
            num_scalar_prefetch=0,
            grid=(num_splits, tiles_per_split),
            in_specs=[
                pl.BlockSpec((tile_r, width), in_map),
                pl.BlockSpec((tile_r, width), in_map),
            ],
            out_specs=pl.BlockSpec((1, 1, 128), lambda p, i: (p, 0, 0)),
            scratch_shapes=[pltpu.VMEM((1, 128), jnp.float32)],
        ),
        compiler_params=pltpu.CompilerParams(
            dimension_semantics=("parallel", "arbitrary"),
            vmem_limit_bytes=32 * 1024 * 1024,
        ),
        cost_estimate=cost,
    )(x, y)

    partials = out[:, 0, 0]                      # one partial sum per core-split
    return jnp.sum(partials) / jnp.float32(N)    # flat mean == mean(-1).mean(-1)


def _reference(pred, gt):
    # Pure-JAX reference matching the PyTorch module (f32 math).
    B, V, C = pred.shape
    diff = (pred.astype(jnp.float32).reshape(-1, C)
            - gt.astype(jnp.float32).reshape(-1, C) + _EPS)
    dist = jnp.sqrt(jnp.sum(diff * diff, axis=-1))
    return dist.reshape(B, V).mean(-1).mean(-1)


if __name__ == "__main__":
    key = jax.random.PRNGKey(0)
    k1, k2, k3, k4 = jax.random.split(key, 4)

    # 1) Typical skeleton-reconstruction shape: single-block fast path + pad masking.
    B, V, C = 2, 25, 3
    pred = jax.random.normal(k1, (B, V, C), dtype=jnp.float32)
    gt = jax.random.normal(k2, (B, V, C), dtype=jnp.float32)
    loss = recon_loss(pred, gt)
    jax.block_until_ready(loss)
    ref = _reference(pred, gt)
    assert jnp.allclose(loss, ref, rtol=1e-5, atol=1e-5), (loss, ref)

    # 2) Force the tiled / 2-split / clamped-tile path at a modest size.
    B2, V2, C2 = 96, 128, 3          # N = 12288 rows -> 96 slab rows -> 3 tiles of 32
    pred2 = jax.random.normal(k3, (B2, V2, C2), dtype=jnp.float32)
    gt2 = jax.random.normal(k4, (B2, V2, C2), dtype=jnp.float32)
    loss2 = recon_loss(pred2, gt2, max_block_rows=32, num_splits=2)
    jax.block_until_ready(loss2)
    ref2 = _reference(pred2, gt2)
    assert jnp.allclose(loss2, ref2, rtol=1e-4, atol=1e-5), (loss2, ref2)

    # 3) Native-dtype (bf16) DMA with in-kernel f32 math.
    pred3 = pred.astype(jnp.bfloat16)
    gt3 = gt.astype(jnp.bfloat16)
    loss3 = recon_loss(pred3, gt3)
    jax.block_until_ready(loss3)
    ref3 = _reference(pred3, gt3)
    assert jnp.allclose(loss3, ref3, rtol=1e-5, atol=1e-5), (loss3, ref3)

    print("KERNEL_OK")
</pallas_src>

<mosaic_0001>
module attributes {stable_mosaic.version = 11 : i64} {
  func.func @_recon_loss_kernel(%arg0: i32, %arg1: i32, %arg2: memref<32x384xf32, #tpu.memory_space<vmem>>, %arg3: memref<32x384xf32, #tpu.memory_space<vmem>>, %arg4: memref<1x1x128xf32, #tpu.memory_space<vmem>>, %arg5: memref<1x128xf32, #tpu.memory_space<vmem>>) attributes {dimension_semantics = [#tpu.dimension_semantics<parallel>, #tpu.dimension_semantics<arbitrary>], iteration_bounds = array<i64: 1, 1>, scalar_prefetch = 0 : i64, scratch_operands = 1 : i64, tpu.core_type = #tpu.core_type<tc>, window_params = [{transform_indices = @transform_0, window_bounds = array<i64: 32, 384>}, {transform_indices = @transform_1, window_bounds = array<i64: 32, 384>}, {transform_indices = @transform_2, window_bounds = array<i64: 1, 1, 128>}]} {
    %c0_i32 = arith.constant 0 : i32
    %0 = arith.cmpi eq, %arg1, %c0_i32 : i32
    %1 = arith.extui %0 : i1 to i32
    %c0_i32_0 = arith.constant 0 : i32
    %2 = arith.cmpi ne, %1, %c0_i32_0 : i32
    scf.if %2 {
      %cst_14 = arith.constant 0.000000e+00 : f32
      %44 = vector.broadcast %cst_14 : f32 to vector<1x128xf32>
      %c0_15 = arith.constant 0 : index
      %c0_16 = arith.constant 0 : index
      %45 = vector.load %arg5[%c0_15, %c0_16] : memref<1x128xf32, #tpu.memory_space<vmem>>, vector<1x128xf32>
      tpu.vector_store %arg5[%c0_15, %c0_16], %44 {strides = array<i32>} : memref<1x128xf32, #tpu.memory_space<vmem>>, vector<1x128xf32>,
    } else {
    }
    %c0 = arith.constant 0 : index
    %c0_1 = arith.constant 0 : index
    %3 = vector.load %arg2[%c0, %c0_1] : memref<32x384xf32, #tpu.memory_space<vmem>>, vector<32x384xf32>
    %c0_2 = arith.constant 0 : index
    %c0_3 = arith.constant 0 : index
    %4 = vector.load %arg3[%c0_2, %c0_3] : memref<32x384xf32, #tpu.memory_space<vmem>>, vector<32x384xf32>
    %5 = arith.subf %3, %4 : vector<32x384xf32>
    %cst = arith.constant 9.99999997E-7 : f32
    %6 = vector.broadcast %cst : f32 to vector<32x384xf32>
    %7 = arith.addf %5, %6 : vector<32x384xf32>
    %8 = arith.mulf %7, %7 : vector<32x384xf32>
    %9 = tpu.iota {dimensions = array<i32: 0>} : vector<384x128xi32>
    %10 = tpu.iota {dimensions = array<i32: 1>} : vector<384x128xi32>
    %c3_i32 = arith.constant 3 : i32
    %11 = vector.broadcast %c3_i32 : i32 to vector<384x128xi32>
    %12 = arith.muli %10, %11 : vector<384x128xi32>
    %13 = arith.cmpi sge, %9, %12 : vector<384x128xi32>
    %c3_i32_4 = arith.constant 3 : i32
    %14 = vector.broadcast %c3_i32_4 : i32 to vector<384x128xi32>
    %15 = arith.addi %12, %14 : vector<384x128xi32>
    %16 = arith.cmpi slt, %9, %15 : vector<384x128xi32>
    %17 = arith.andi %13, %16 : vector<384x128xi1>
    %18 = arith.extui %17 : vector<384x128xi1> to vector<384x128xi32>
    %19 = arith.sitofp %18 : vector<384x128xi32> to vector<384x128xf32>
    %cst_5 = arith.constant dense<0.000000e+00> : vector<32x128xf32>
    %20 = tpu.matmul %8, %19, %cst_5 {dimension_numbers = #tpu.dot_dimension_numbers<[1], [0], [0], [1], [0, 0, 1, 1], [], []>} : vector<32x384xf32>, vector<384x128xf32>, vector<32x128xf32> -> vector<32x128xf32>
    %21 = math.sqrt %20 : vector<32x128xf32>
    %c1_i32 = arith.constant 1 : i32
    %22 = arith.muli %arg0, %c1_i32 : i32
    %23 = arith.addi %22, %arg1 : i32
    %24 = tpu.iota {dimensions = array<i32: 0>} : vector<32x128xi32>
    %25 = tpu.iota {dimensions = array<i32: 1>} : vector<32x128xi32>
    %c32_i32 = arith.constant 32 : i32
    %26 = arith.muli %23, %c32_i32 : i32
    %27 = vector.broadcast %26 : i32 to vector<32x128xi32>
    %28 = arith.addi %27, %24 : vector<32x128xi32>
    %c128_i32 = arith.constant 128 : i32
    %29 = vector.broadcast %c128_i32 : i32 to vector<32x128xi32>
    %30 = arith.muli %28, %29 : vector<32x128xi32>
    %31 = arith.addi %30, %25 : vector<32x128xi32>
    %c50_i32 = arith.constant 50 : i32
    %32 = vector.broadcast %c50_i32 : i32 to vector<32x128xi32>
    %33 = arith.cmpi slt, %31, %32 : vector<32x128xi32>
    %cst_6 = arith.constant 0.000000e+00 : f32
    %34 = vector.broadcast %cst_6 : f32 to vector<32x128xf32>
    %35 = arith.select %33, %21, %34 : vector<32x128xi1>, vector<32x128xf32>
    %c0_7 = arith.constant 0 : index
    %c0_8 = arith.constant 0 : index
    %36 = vector.load %arg5[%c0_7, %c0_8] : memref<1x128xf32, #tpu.memory_space<vmem>>, vector<1x128xf32>
    %cst_9 = arith.constant dense<0.000000e+00> : vector<128xf32>
    %37 = vector.multi_reduction <add>, %35, %cst_9 [0] : vector<32x128xf32> to vector<128xf32>
    %38 = vector.shape_cast %37 : vector<128xf32> to vector<1x128xf32>
    %39 = arith.addf %36, %38 : vector<1x128xf32>
    %c0_10 = arith.constant 0 : index
    %c0_11 = arith.constant 0 : index
    %40 = vector.load %arg5[%c0_10, %c0_11] : memref<1x128xf32, #tpu.memory_space<vmem>>, vector<1x128xf32>
    tpu.vector_store %arg5[%c0_10, %c0_11], %39 {strides = array<i32>} : memref<1x128xf32, #tpu.memory_space<vmem>>, vector<1x128xf32>,
    %c0_i32_12 = arith.constant 0 : i32
    %41 = arith.cmpi eq, %arg1, %c0_i32_12 : i32
    %42 = arith.extui %41 : i1 to i32
    %c0_i32_13 = arith.constant 0 : i32
    %43 = arith.cmpi ne, %42, %c0_i32_13 : i32
    scf.if %43 {
      %c0_14 = arith.constant 0 : index
      %c0_15 = arith.constant 0 : index
      %44 = vector.load %arg5[%c0_14, %c0_15] : memref<1x128xf32, #tpu.memory_space<vmem>>, vector<1x128xf32>
      %45 = vector.shape_cast %44 : vector<1x128xf32> to vector<1x1x128xf32>
      %cst_16 = arith.constant dense<0.000000e+00> : vector<1xf32>
      %46 = vector.multi_reduction <add>, %45, %cst_16 [1, 2] : vector<1x1x128xf32> to vector<1xf32>
      %47 = vector.shape_cast %46 : vector<1xf32> to vector<1x1x1xf32>
      %48 = vector.extract %47[0, 0, 0] : f32 from vector<1x1x1xf32>
      %49 = vector.broadcast %48 : f32 to vector<1x1x128xf32>
      %c0_17 = arith.constant 0 : index
      %c0_18 = arith.constant 0 : index
      %c0_19 = arith.constant 0 : index
      %50 = vector.load %arg4[%c0_17, %c0_18, %c0_19] : memref<1x1x128xf32, #tpu.memory_space<vmem>>, vector<1x1x128xf32>
      tpu.vector_store %arg4[%c0_17, %c0_18, %c0_19], %49 {strides = array<i32>} : memref<1x1x128xf32, #tpu.memory_space<vmem>>, vector<1x1x128xf32>,
    } else {
    }
    return
  }
  func.func @transform_0(%arg0: i32, %arg1: i32) -> (i32, i32) {
    %c1_i32 = arith.constant 1 : i32
    %0 = arith.muli %arg0, %c1_i32 : i32
    %1 = arith.addi %0, %arg1 : i32
    %c0_i32 = arith.constant 0 : i32
    %2 = arith.minsi %1, %c0_i32 : i32
    %c0_i32_0 = arith.constant 0 : i32
    %c0_i32_1 = arith.constant 0 : i32
    return %2, %c0_i32_0 : i32, i32
  }
  func.func @transform_1(%arg0: i32, %arg1: i32) -> (i32, i32) {
    %c1_i32 = arith.constant 1 : i32
    %0 = arith.muli %arg0, %c1_i32 : i32
    %1 = arith.addi %0, %arg1 : i32
    %c0_i32 = arith.constant 0 : i32
    %2 = arith.minsi %1, %c0_i32 : i32
    %c0_i32_0 = arith.constant 0 : i32
    %c0_i32_1 = arith.constant 0 : i32
    return %2, %c0_i32_0 : i32, i32
  }
  func.func @transform_2(%arg0: i32, %arg1: i32) -> (i32, i32, i32) {
    %c0_i32 = arith.constant 0 : i32
    %c0_i32_0 = arith.constant 0 : i32
    %c0_i32_1 = arith.constant 0 : i32
    return %arg0, %c0_i32, %c0_i32_0 : i32, i32, i32
  }
}

</mosaic_0001>

<llo_original>
// kernel: tpu_custom_call.1
$region0: #{tpu_custom_call.1}
  #allocation0 [shape = 'u32[]', space=smem, size = 0x4, offset = 0x4, fixed_abs, tag = 'smem constant byte address 0x4 - core index']
  #allocation1 [shape = 'u32[144,128]{1,0:T(1,128)}', space=vmem, size = 0x12000, scoped, tag = 'internal scratch']
  #allocation2 [shape = 'f32[1,128]{1,0:T(1,128)}', space=vmem, size = 0x200, scoped, tag = 'scratch operand']
  %s0 = inlined_call_operand.hbm [shape: f32[32,384], index: 0, kind: input, shape index: {}]
  %s1 = inlined_call_operand.hbm [shape: f32[32,384], index: 1, kind: input, shape index: {}]
  %s2 = inlined_call_operand.hbm [shape: f32[1,1,128], index: 2, kind: output, shape index: {}]
  %s3 = sld [smem:[#allocation0]]
  $region34: #{tpu_custom_call.1} parent=0
    _
  %s5 = ssub.s32 1, %s3
  %s6 = scalar_select 0, %s5, %s3
  $region1: #{tpu_custom_call.1} parent=0
    #allocation3 [shape = 'u8[49152]{0}', space=vmem, size = 0xc000, scoped, tag = 'input window, operand 0, single buffered']
    #allocation4 [shape = 's32[1]{0}', space=sflag, size = 0x4, scoped, tag = 'scoped memory for tpu_custom_call.1']
    #allocation5 [shape = 's32[1]{0}', space=sflag, size = 0x4, scoped, tag = 'scoped memory for tpu_custom_call.1']
    #allocation6 [shape = 'u8[49152]{0}', space=vmem, size = 0xc000, scoped, tag = 'input window, operand 1, single buffered']
    #allocation7 [shape = 's32[1]{0}', space=sflag, size = 0x4, scoped, tag = 'scoped memory for tpu_custom_call.1']
    #allocation8 [shape = 'u8[512]{0}', space=vmem, size = 0x400, scoped, tag = 'output window, operand 0, single buffered']
    %7 = vsyncpa [#allocation4], 0
    %8 = vsyncpa [#allocation7], 0
    %9 = vsyncpa [#allocation5], 0
    // Predicated region
    $region2: #{tpu_custom_call.1} parent=1 // pred_check
      _
    $region3: #{tpu_custom_call.1} parent=1 // pred_check_branch
      %11 = sbr.rel (0) target = $region5
    $region4: #{tpu_custom_call.1} parent=1 // pred_region
      %s12 = sadd.s32 0, 0
      %p13 = scmp.lt.s32.totalorder %s12, 0
      %s14 = scalar_select %p13, %s12, 0
      %s15 = smul.u32 4, %s14
      %s17 = ssub.s32 1536, 1536
      %18 = vsyncadd [#allocation4], %s17
      %s19 = smul.addr %s15, 3
      %s20 = smul.addr %s19, 128
      %s21 = scalar_lea.hbm %s0, %s20
      %s22 = sshll.u32 [#allocation3], 4
      %s23 = int_to_ptr.vmem [resolvable:$true] %s22
      %28 = dma.hbm_to_vmem [thread:$0]  %s21, 1536, %s23, [#allocation4], 384, 384, 24
    $region5: #{tpu_custom_call.1} parent=1 // pred_fallthru
      _
    // Predicated region
    $region6: #{tpu_custom_call.1} parent=1 // pred_check
      _
    $region7: #{tpu_custom_call.1} parent=1 // pred_check_branch
      %30 = sbr.rel (0) target = $region9
    $region8: #{tpu_custom_call.1} parent=1 // pred_region
      %s31 = sadd.s32 0, 0
      %p32 = scmp.lt.s32.totalorder %s31, 0
      %s33 = scalar_select %p32, %s31, 0
      %s34 = smul.u32 4, %s33
      %s36 = ssub.s32 1536, 1536
      %37 = vsyncadd [#allocation7], %s36
      %s38 = smul.addr %s34, 3
      %s39 = smul.addr %s38, 128
      %s40 = scalar_lea.hbm %s1, %s39
      %s41 = sshll.u32 [#allocation6], 4
      %s42 = int_to_ptr.vmem [resolvable:$true] %s41
      %47 = dma.hbm_to_vmem [thread:$0]  %s40, 1536, %s42, [#allocation7], 384, 384, 24
    $region9: #{tpu_custom_call.1} parent=1 // pred_fallthru
      _
    // Predicated region
    $region10: #{tpu_custom_call.1} parent=1 // pred_check
      _
    $region11: #{tpu_custom_call.1} parent=1 // pred_check_branch
      %49 = sbr.rel (0) target = $region13
    $region12: #{tpu_custom_call.1} parent=1 // pred_region
      %50 = dma.done [#allocation4], 1536
    $region13: #{tpu_custom_call.1} parent=1 // pred_fallthru
      _
    // Predicated region
    $region14: #{tpu_custom_call.1} parent=1 // pred_check
      _
    $region15: #{tpu_custom_call.1} parent=1 // pred_check_branch
      %52 = sbr.rel (0) target = $region17
    $region16: #{tpu_custom_call.1} parent=1 // pred_region
      %53 = dma.done [#allocation7], 1536
    $region17: #{tpu_custom_call.1} parent=1 // pred_fallthru
      _
    %s54 = sadd.s32 0, 0
    %p55 = scmp.lt.s32.totalorder %s54, 0
    %s56 = scalar_select %p55, %s54, 0
    %s57 = smul.u32 4, %s56
    %s58 = sadd.s32 0, 0
    %p59 = scmp.lt.s32.totalorder %s58, 0
    %s60 = scalar_select %p59, %s58, 0
    %s61 = smul.u32 4, %s60
    %p62 = scmp.eq.s32.totalorder 0, 0
    // Predicated region
    $region18: #{tpu_custom_call.1} parent=1 // pred_check
      %p63 = pneg %p62
    $region19: #{tpu_custom_call.1} parent=1 // pred_check_branch
      %65 = sbr.rel (%p63) target = $region21
    $region20: #{tpu_custom_call.1} parent=1 // pred_region
      %66 = vst [vmem:[#allocation2] sm:$0x1] 0.0
    $region21: #{tpu_custom_call.1} parent=1 // pred_fallthru
      _
    %v67 = vld [vmem:[#allocation3] sm:$0xff]
    %v68 = vld [vmem:[#allocation3 + $0x8] sm:$0xff]
    %v69 = vld [vmem:[#allocation3 + $0x10] sm:$0xff]
    %v70 = vld [vmem:[#allocation3 + $0x18] sm:$0xff]
    %v71 = vld [vmem:[#allocation3 + $0x20] sm:$0xff]
    %v72 = vld [vmem:[#allocation3 + $0x28] sm:$0xff]
    %v73 = vld [vmem:[#allocation3 + $0x30] sm:$0xff]
    %v74 = vld [vmem:[#allocation3 + $0x38] sm:$0xff]
    %v75 = vld [vmem:[#allocation3 + $0x40] sm:$0xff]
    %v76 = vld [vmem:[#allocation3 + $0x48] sm:$0xff]
    %v77 = vld [vmem:[#allocation3 + $0x50] sm:$0xff]
    %v78 = vld [vmem:[#allocation3 + $0x58] sm:$0xff]
    %v79 = vld [vmem:[#allocation6] sm:$0xff]
    %v80 = vld [vmem:[#allocation6 + $0x8] sm:$0xff]
    %v81 = vld [vmem:[#allocation6 + $0x10] sm:$0xff]
    %v82 = vld [vmem:[#allocation6 + $0x18] sm:$0xff]
    %v83 = vld [vmem:[#allocation6 + $0x20] sm:$0xff]
    %v84 = vld [vmem:[#allocation6 + $0x28] sm:$0xff]
    %v85 = vld [vmem:[#allocation6 + $0x30] sm:$0xff]
    %v86 = vld [vmem:[#allocation6 + $0x38] sm:$0xff]
    %v87 = vld [vmem:[#allocation6 + $0x40] sm:$0xff]
    %v88 = vld [vmem:[#allocation6 + $0x48] sm:$0xff]
    %v89 = vld [vmem:[#allocation6 + $0x50] sm:$0xff]
    %v90 = vld [vmem:[#allocation6 + $0x58] sm:$0xff]
    %v91 = vsub.f32 %v67, %v79
    %v92 = vsub.f32 %v68, %v80
    %v93 = vsub.f32 %v69, %v81
    %v94 = vsub.f32 %v70, %v82
    %v95 = vsub.f32 %v71, %v83
    %v96 = vsub.f32 %v72, %v84
    %v97 = vsub.f32 %v73, %v85
    %v98 = vsub.f32 %v74, %v86
    %v99 = vsub.f32 %v75, %v87
    %v100 = vsub.f32 %v76, %v88
    %v101 = vsub.f32 %v77, %v89
    %v102 = vsub.f32 %v78, %v90
    %v103 = vadd.f32 %v91, 1e-06
    %v104 = vadd.f32 %v92, 1e-06
    %v105 = vadd.f32 %v93, 1e-06
    %v106 = vadd.f32 %v94, 1e-06
    %v107 = vadd.f32 %v95, 1e-06
    %v108 = vadd.f32 %v96, 1e-06
    %v109 = vadd.f32 %v97, 1e-06
    %v110 = vadd.f32 %v98, 1e-06
    %v111 = vadd.f32 %v99, 1e-06
    %v112 = vadd.f32 %v100, 1e-06
    %v113 = vadd.f32 %v101, 1e-06
    %v114 = vadd.f32 %v102, 1e-06
    %v115 = vmul.f32 %v103, %v103
    %v116 = vmul.f32 %v104, %v104
    %v117 = vmul.f32 %v105, %v105
    %v118 = vmul.f32 %v106, %v106
    %v119 = vmul.f32 %v107, %v107
    %v120 = vmul.f32 %v108, %v108
    %v121 = vmul.f32 %v109, %v109
    %v122 = vmul.f32 %v110, %v110
    %v123 = vmul.f32 %v111, %v111
    %v124 = vmul.f32 %v112, %v112
    %v125 = vmul.f32 %v113, %v113
    %v126 = vmul.f32 %v114, %v114
    %v127 = vlaneseq
    %v128 = vshrl.u32 %v127, 7
    %v129 = vadd.s32 %v128, 8
    %v130 = vadd.s32 %v128, 16
    %v131 = vadd.s32 %v128, 24
    %v132 = vadd.s32 %v128, 32
    %v133 = vadd.s32 %v128, 40
    %v134 = vadd.s32 %v128, 48
    %v135 = vadd.s32 %v128, 56
    %v136 = vadd.s32 %v128, 64
    %v137 = vadd.s32 %v128, 72
    %v138 = vadd.s32 %v128, 80
    %v139 = vadd.s32 %v128, 88
    %v140 = vadd.s32 %v128, 96
    %v141 = vadd.s32 %v128, 104
    %v142 = vadd.s32 %v128, 112
    %v143 = vadd.s32 %v128, 120
    %v144 = vadd.s32 %v128, 128
    %v145 = vadd.s32 %v128, 136
    %v146 = vadd.s32 %v128, 144
    %v147 = vadd.s32 %v128, 152
    %v148 = vadd.s32 %v128, 160
    %v149 = vadd.s32 %v128, 168
    %v150 = vadd.s32 %v128, 176
    %v151 = vadd.s32 %v128, 184
    %v152 = vadd.s32 %v128, 192
    %v153 = vadd.s32 %v128, 200
    %v154 = vadd.s32 %v128, 208
    %v155 = vadd.s32 %v128, 216
    %v156 = vadd.s32 %v128, 224
    %v157 = vadd.s32 %v128, 232
    %v158 = vadd.s32 %v128, 240
    %v159 = vadd.s32 %v128, 248
    %v160 = vadd.s32 %v128, 256
    %v161 = vadd.s32 %v128, 264
    %v162 = vadd.s32 %v128, 272
    %v163 = vadd.s32 %v128, 280
    %v164 = vadd.s32 %v128, 288
    %v165 = vadd.s32 %v128, 296
    %v166 = vadd.s32 %v128, 304
    %v167 = vadd.s32 %v128, 312
    %v168 = vadd.s32 %v128, 320
    %v169 = vadd.s32 %v128, 328
    %v170 = vadd.s32 %v128, 336
    %v171 = vadd.s32 %v128, 344
    %v172 = vadd.s32 %v128, 352
    %v173 = vadd.s32 %v128, 360
    %v174 = vadd.s32 %v128, 368
    %v175 = vadd.s32 %v128, 376
    %v176 = vlaneseq
    %v177 = vand.u32 %v176, 127
    %v178 = vmul.u32 %v177, 3
    %vm179 = vcmp.ge.s32.totalorder %v128, %v178
    %vm180 = vcmp.ge.s32.totalorder %v129, %v178
    %vm181 = vcmp.ge.s32.totalorder %v130, %v178
    %vm182 = vcmp.ge.s32.totalorder %v131, %v178
    %vm183 = vcmp.ge.s32.totalorder %v132, %v178
    %vm184 = vcmp.ge.s32.totalorder %v133, %v178
    %vm185 = vcmp.ge.s32.totalorder %v134, %v178
    %vm186 = vcmp.ge.s32.totalorder %v135, %v178
    %vm187 = vcmp.ge.s32.totalorder %v136, %v178
    %vm188 = vcmp.ge.s32.totalorder %v137, %v178
    %vm189 = vcmp.ge.s32.totalorder %v138, %v178
    %vm190 = vcmp.ge.s32.totalorder %v139, %v178
    %vm191 = vcmp.ge.s32.totalorder %v140, %v178
    %vm192 = vcmp.ge.s32.totalorder %v141, %v178
    %vm193 = vcmp.ge.s32.totalorder %v142, %v178
    %vm194 = vcmp.ge.s32.totalorder %v143, %v178
    %vm195 = vcmp.ge.s32.totalorder %v144, %v178
    %vm196 = vcmp.ge.s32.totalorder %v145, %v178
    %vm197 = vcmp.ge.s32.totalorder %v146, %v178
    %vm198 = vcmp.ge.s32.totalorder %v147, %v178
    %vm199 = vcmp.ge.s32.totalorder %v148, %v178
    %vm200 = vcmp.ge.s32.totalorder %v149, %v178
    %vm201 = vcmp.ge.s32.totalorder %v150, %v178
    %vm202 = vcmp.ge.s32.totalorder %v151, %v178
    %vm203 = vcmp.ge.s32.totalorder %v152, %v178
    %vm204 = vcmp.ge.s32.totalorder %v153, %v178
    %vm205 = vcmp.ge.s32.totalorder %v154, %v178
    %vm206 = vcmp.ge.s32.totalorder %v155, %v178
    %vm207 = vcmp.ge.s32.totalorder %v156, %v178
    %vm208 = vcmp.ge.s32.totalorder %v157, %v178
    %vm209 = vcmp.ge.s32.totalorder %v158, %v178
    %vm210 = vcmp.ge.s32.totalorder %v159, %v178
    %vm211 = vcmp.ge.s32.totalorder %v160, %v178
    %vm212 = vcmp.ge.s32.totalorder %v161, %v178
    %vm213 = vcmp.ge.s32.totalorder %v162, %v178
    %vm214 = vcmp.ge.s32.totalorder %v163, %v178
    %vm215 = vcmp.ge.s32.totalorder %v164, %v178
    %vm216 = vcmp.ge.s32.totalorder %v165, %v178
    %vm217 = vcmp.ge.s32.totalorder %v166, %v178
    %vm218 = vcmp.ge.s32.totalorder %v167, %v178
    %vm219 = vcmp.ge.s32.totalorder %v168, %v178
    %vm220 = vcmp.ge.s32.totalorder %v169, %v178
    %vm221 = vcmp.ge.s32.totalorder %v170, %v178
    %vm222 = vcmp.ge.s32.totalorder %v171, %v178
    %vm223 = vcmp.ge.s32.totalorder %v172, %v178
    %vm224 = vcmp.ge.s32.totalorder %v173, %v178
    %vm225 = vcmp.ge.s32.totalorder %v174, %v178
    %vm226 = vcmp.ge.s32.totalorder %v175, %v178
    %v227 = vadd.s32 %v178, 3
    %vm228 = vcmp.lt.s32.totalorder %v128, %v227
    %vm229 = vcmp.lt.s32.totalorder %v129, %v227
    %vm230 = vcmp.lt.s32.totalorder %v130, %v227
    %vm231 = vcmp.lt.s32.totalorder %v131, %v227
    %vm232 = vcmp.lt.s32.totalorder %v132, %v227
    %vm233 = vcmp.lt.s32.totalorder %v133, %v227
    %vm234 = vcmp.lt.s32.totalorder %v134, %v227
    %vm235 = vcmp.lt.s32.totalorder %v135, %v227
    %vm236 = vcmp.lt.s32.totalorder %v136, %v227
    %vm237 = vcmp.lt.s32.totalorder %v137, %v227
    %vm238 = vcmp.lt.s32.totalorder %v138, %v227
    %vm239 = vcmp.lt.s32.totalorder %v139, %v227
    %vm240 = vcmp.lt.s32.totalorder %v140, %v227
    %vm241 = vcmp.lt.s32.totalorder %v141, %v227
    %vm242 = vcmp.lt.s32.totalorder %v142, %v227
    %vm243 = vcmp.lt.s32.totalorder %v143, %v227
    %vm244 = vcmp.lt.s32.totalorder %v144, %v227
    %vm245 = vcmp.lt.s32.totalorder %v145, %v227
    %vm246 = vcmp.lt.s32.totalorder %v146, %v227
    %vm247 = vcmp.lt.s32.totalorder %v147, %v227
    %vm248 = vcmp.lt.s32.totalorder %v148, %v227
    %vm249 = vcmp.lt.s32.totalorder %v149, %v227
    %vm250 = vcmp.lt.s32.totalorder %v150, %v227
    %vm251 = vcmp.lt.s32.totalorder %v151, %v227
    %vm252 = vcmp.lt.s32.totalorder %v152, %v227
    %vm253 = vcmp.lt.s32.totalorder %v153, %v227
    %vm254 = vcmp.lt.s32.totalorder %v154, %v227
    %vm255 = vcmp.lt.s32.totalorder %v155, %v227
    %vm256 = vcmp.lt.s32.totalorder %v156, %v227
    %vm257 = vcmp.lt.s32.totalorder %v157, %v227
    %vm258 = vcmp.lt.s32.totalorder %v158, %v227
    %vm259 = vcmp.lt.s32.totalorder %v159, %v227
    %vm260 = vcmp.lt.s32.totalorder %v160, %v227
    %vm261 = vcmp.lt.s32.totalorder %v161, %v227
    %vm262 = vcmp.lt.s32.totalorder %v162, %v227
    %vm263 = vcmp.lt.s32.totalorder %v163, %v227
    %vm264 = vcmp.lt.s32.totalorder %v164, %v227
    %vm265 = vcmp.lt.s32.totalorder %v165, %v227
    %vm266 = vcmp.lt.s32.totalorder %v166, %v227
    %vm267 = vcmp.lt.s32.totalorder %v167, %v227
    %vm268 = vcmp.lt.s32.totalorder %v168, %v227
    %vm269 = vcmp.lt.s32.totalorder %v169, %v227
    %vm270 = vcmp.lt.s32.totalorder %v170, %v227
    %vm271 = vcmp.lt.s32.totalorder %v171, %v227
    %vm272 = vcmp.lt.s32.totalorder %v172, %v227
    %vm273 = vcmp.lt.s32.totalorder %v173, %v227
    %vm274 = vcmp.lt.s32.totalorder %v174, %v227
    %vm275 = vcmp.lt.s32.totalorder %v175, %v227
    %vm276 = vmand %vm179, %vm228
    %vm277 = vmand %vm180, %vm229
    %vm278 = vmand %vm181, %vm230
    %vm279 = vmand %vm182, %vm231
    %vm280 = vmand %vm183, %vm232
    %vm281 = vmand %vm184, %vm233
    %vm282 = vmand %vm185, %vm234
    %vm283 = vmand %vm186, %vm235
    %vm284 = vmand %vm187, %vm236
    %vm285 = vmand %vm188, %vm237
    %vm286 = vmand %vm189, %vm238
    %vm287 = vmand %vm190, %vm239
    %vm288 = vmand %vm191, %vm240
    %vm289 = vmand %vm192, %vm241
    %vm290 = vmand %vm193, %vm242
    %vm291 = vmand %vm194, %vm243
    %vm292 = vmand %vm195, %vm244
    %vm293 = vmand %vm196, %vm245
    %vm294 = vmand %vm197, %vm246
    %vm295 = vmand %vm198, %vm247
    %vm296 = vmand %vm199, %vm248
    %vm297 = vmand %vm200, %vm249
    %vm298 = vmand %vm201, %vm250
    %vm299 = vmand %vm202, %vm251
    %vm300 = vmand %vm203, %vm252
    %vm301 = vmand %vm204, %vm253
    %vm302 = vmand %vm205, %vm254
    %vm303 = vmand %vm206, %vm255
    %vm304 = vmand %vm207, %vm256
    %vm305 = vmand %vm208, %vm257
    %vm306 = vmand %vm209, %vm258
    %vm307 = vmand %vm210, %vm259
    %vm308 = vmand %vm211, %vm260
    %vm309 = vmand %vm212, %vm261
    %vm310 = vmand %vm213, %vm262
    %vm311 = vmand %vm214, %vm263
    %vm312 = vmand %vm215, %vm264
    %vm313 = vmand %vm216, %vm265
    %vm314 = vmand %vm217, %vm266
    %vm315 = vmand %vm218, %vm267
    %vm316 = vmand %vm219, %vm268
    %vm317 = vmand %vm220, %vm269
    %vm318 = vmand %vm221, %vm270
    %vm319 = vmand %vm222, %vm271
    %vm320 = vmand %vm223, %vm272
    %vm321 = vmand %vm224, %vm273
    %vm322 = vmand %vm225, %vm274
    %vm323 = vmand %vm226, %vm275
    %v324 = vsel %vm276, 1, 0
    %v325 = vsel %vm277, 1, 0
    %v326 = vsel %vm278, 1, 0
    %v327 = vsel %vm279, 1, 0
    %v328 = vsel %vm280, 1, 0
    %v329 = vsel %vm281, 1, 0
    %v330 = vsel %vm282, 1, 0
    %v331 = vsel %vm283, 1, 0
    %v332 = vsel %vm284, 1, 0
    %v333 = vsel %vm285, 1, 0
    %v334 = vsel %vm286, 1, 0
    %v335 = vsel %vm287, 1, 0
    %v336 = vsel %vm288, 1, 0
    %v337 = vsel %vm289, 1, 0
    %v338 = vsel %vm290, 1, 0
    %v339 = vsel %vm291, 1, 0
    %v340 = vsel %vm292, 1, 0
    %v341 = vsel %vm293, 1, 0
    %v342 = vsel %vm294, 1, 0
    %v343 = vsel %vm295, 1, 0
    %v344 = vsel %vm296, 1, 0
    %v345 = vsel %vm297, 1, 0
    %v346 = vsel %vm298, 1, 0
    %v347 = vsel %vm299, 1, 0
    %v348 = vsel %vm300, 1, 0
    %v349 = vsel %vm301, 1, 0
    %v350 = vsel %vm302, 1, 0
    %v351 = vsel %vm303, 1, 0
    %v352 = vsel %vm304, 1, 0
    %v353 = vsel %vm305, 1, 0
    %v354 = vsel %vm306, 1, 0
    %v355 = vsel %vm307, 1, 0
    %v356 = vsel %vm308, 1, 0
    %v357 = vsel %vm309, 1, 0
    %v358 = vsel %vm310, 1, 0
    %v359 = vsel %vm311, 1, 0
    %v360 = vsel %vm312, 1, 0
    %v361 = vsel %vm313, 1, 0
    %v362 = vsel %vm314, 1, 0
    %v363 = vsel %vm315, 1, 0
    %v364 = vsel %vm316, 1, 0
    %v365 = vsel %vm317, 1, 0
    %v366 = vsel %vm318, 1, 0
    %v367 = vsel %vm319, 1, 0
    %v368 = vsel %vm320, 1, 0
    %v369 = vsel %vm321, 1, 0
    %v370 = vsel %vm322, 1, 0
    %v371 = vsel %vm323, 1, 0
    %v372 = vcvt.s32.f32 %v324
    %v373 = vcvt.s32.f32 %v325
    %v374 = vcvt.s32.f32 %v326
    %v375 = vcvt.s32.f32 %v327
    %v376 = vcvt.s32.f32 %v328
    %v377 = vcvt.s32.f32 %v329
    %v378 = vcvt.s32.f32 %v330
    %v379 = vcvt.s32.f32 %v331
    %v380 = vcvt.s32.f32 %v332
    %v381 = vcvt.s32.f32 %v333
    %v382 = vcvt.s32.f32 %v334
    %v383 = vcvt.s32.f32 %v335
    %v384 = vcvt.s32.f32 %v336
    %v385 = vcvt.s32.f32 %v337
    %v386 = vcvt.s32.f32 %v338
    %v387 = vcvt.s32.f32 %v339
    %v388 = vcvt.s32.f32 %v340
    %v389 = vcvt.s32.f32 %v341
    %v390 = vcvt.s32.f32 %v342
    %v391 = vcvt.s32.f32 %v343
    %v392 = vcvt.s32.f32 %v344
    %v393 = vcvt.s32.f32 %v345
    %v394 = vcvt.s32.f32 %v346
    %v395 = vcvt.s32.f32 %v347
    %v396 = vcvt.s32.f32 %v348
    %v397 = vcvt.s32.f32 %v349
    %v398 = vcvt.s32.f32 %v350
    %v399 = vcvt.s32.f32 %v351
    %v400 = vcvt.s32.f32 %v352
    %v401 = vcvt.s32.f32 %v353
    %v402 = vcvt.s32.f32 %v354
    %v403 = vcvt.s32.f32 %v355
    %v404 = vcvt.s32.f32 %v356
    %v405 = vcvt.s32.f32 %v357
    %v406 = vcvt.s32.f32 %v358
    %v407 = vcvt.s32.f32 %v359
    %v408 = vcvt.s32.f32 %v360
    %v409 = vcvt.s32.f32 %v361
    %v410 = vcvt.s32.f32 %v362
    %v411 = vcvt.s32.f32 %v363
    %v412 = vcvt.s32.f32 %v364
    %v413 = vcvt.s32.f32 %v365
    %v414 = vcvt.s32.f32 %v366
    %v415 = vcvt.s32.f32 %v367
    %v416 = vcvt.s32.f32 %v368
    %v417 = vcvt.s32.f32 %v369
    %v418 = vcvt.s32.f32 %v370
    %v419 = vcvt.s32.f32 %v371
    %420 = vmatprep.subr.mxu0 0.0
    %421 = vmatpush1.msra.mxu0 %v372
    %422 = vmatprep.subr.mxu0 0.0
    %423 = vmatpush1.msra.mxu0 %v373
    %424 = vmatprep.subr.mxu0 0.0
    %425 = vmatpush1.msra.mxu0 %v374
    %426 = vmatprep.subr.mxu0 0.0
    %427 = vmatpush1.msra.mxu0 %v375
    %428 = vmatprep.subr.mxu0 0.0
    %429 = vmatpush1.msra.mxu0 %v376
    %430 = vmatprep.subr.mxu0 0.0
    %431 = vmatpush1.msra.mxu0 %v377
    %432 = vmatprep.subr.mxu0 0.0
    %433 = vmatpush1.msra.mxu0 %v378
    %434 = vmatprep.subr.mxu0 0.0
    %435 = vmatpush1.msra.mxu0 %v379
    %436 = vmatprep.subr.mxu0 0.0
    %437 = vmatpush1.msra.mxu0 %v380
    %438 = vmatprep.subr.mxu0 0.0
    %439 = vmatpush1.msra.mxu0 %v381
    %440 = vmatprep.subr.mxu0 0.0
    %441 = vmatpush1.msra.mxu0 %v382
    %442 = vmatprep.subr.mxu0 0.0
    %443 = vmatpush1.msra.mxu0 %v383
    %444 = vmatprep.subr.mxu0 0.0
    %445 = vmatpush1.msra.mxu0 %v384
    %446 = vmatprep.subr.mxu0 0.0
    %447 = vmatpush1.msra.mxu0 %v385
    %448 = vmatprep.subr.mxu0 0.0
    %449 = vmatpush1.msra.mxu0 %v386
    %450 = vmatprep.subr.mxu0 0.0
    %451 = vmatpush1.msra.mxu0 %v387
    %452 = vmatprep.subr.mxu0 0.0
    %453 = vmatpush1.msra.mxu0 %v388
    %454 = vmatprep.subr.mxu0 0.0
    %455 = vmatpush1.msra.mxu0 %v389
    %456 = vmatprep.subr.mxu0 0.0
    %457 = vmatpush1.msra.mxu0 %v390
    %458 = vmatprep.subr.mxu0 0.0
    %459 = vmatpush1.msra.mxu0 %v391
    %460 = vmatprep.subr.mxu0 0.0
    %461 = vmatpush1.msra.mxu0 %v392
    %462 = vmatprep.subr.mxu0 0.0
    %463 = vmatpush1.msra.mxu0 %v393
    %464 = vmatprep.subr.mxu0 0.0
    %465 = vmatpush1.msra.mxu0 %v394
    %466 = vmatprep.subr.mxu0 0.0
    %467 = vmatpush1.msra.mxu0 %v395
    %468 = vmatprep.subr.mxu0 0.0
    %469 = vmatpush1.msra.mxu0 %v396
    %470 = vmatprep.subr.mxu0 0.0
    %471 = vmatpush1.msra.mxu0 %v397
    %472 = vmatprep.subr.mxu0 0.0
    %473 = vmatpush1.msra.mxu0 %v398
    %474 = vmatprep.subr.mxu0 0.0
    %475 = vmatpush1.msra.mxu0 %v399
    %476 = vmatprep.subr.mxu0 0.0
    %477 = vmatpush1.msra.mxu0 %v400
    %478 = vmatprep.subr.mxu0 0.0
    %479 = vmatpush1.msra.mxu0 %v401
    %480 = vmatprep.subr.mxu0 0.0
    %481 = vmatpush1.msra.mxu0 %v402
    %482 = vmatprep.subr.mxu0 0.0
    %483 = vmatpush1.msra.mxu0 %v403
    %484 = vmatprep.mubr.f32.mxu0 %v116
    %485 = vmatmul.mubr.f32.gmra.mrb[0].mxu0 %v115
    %v486 = vpop.f32.mrb[0].mxu0
    %v487 = vadd.f32 0.0, %v486
    %v488 = vpop.f32.mrb[0].mxu0
    %489 = vmatprep.mubr.f32.mxu0 %v119
    %490 = vmatmul.mubr.f32.gmra.mrb[0].mxu0 %v118
    %v491 = vpop.f32.mrb[0].mxu0
    %v492 = vadd.f32 0.0, %v491
    %v493 = vpop.f32.mrb[0].mxu0
    %494 = vmatprep.mubr.f32.mxu0 %v122
    %495 = vmatmul.mubr.f32.gmra.mrb[0].mxu0 %v121
    %v496 = vpop.f32.mrb[0].mxu0
    %v497 = vadd.f32 0.0, %v496
    %v498 = vpop.f32.mrb[0].mxu0
    %499 = vmatprep.mubr.f32.mxu0 %v125
    %500 = vmatmul.mubr.f32.gmra.mrb[0].mxu0 %v124
    %v501 = vpop.f32.mrb[0].mxu0
    %v502 = vadd.f32 0.0, %v501
    %v503 = vpop.f32.mrb[0].mxu0
    %504 = vdwg.mxu0
    %505 = vmatprep.subr.mxu0 0.0
    %506 = vmatpush1.msra.mxu0 %v404
    %507 = vmatprep.subr.mxu0 0.0
    %508 = vmatpush1.msra.mxu0 %v405
    %509 = vmatprep.subr.mxu0 0.0
    %510 = vmatpush1.msra.mxu0 %v406
    %511 = vmatprep.subr.mxu0 0.0
    %512 = vmatpush1.msra.mxu0 %v407
    %513 = vmatprep.subr.mxu0 0.0
    %514 = vmatpush1.msra.mxu0 %v408
    %515 = vmatprep.subr.mxu0 0.0
    %516 = vmatpush1.msra.mxu0 %v409
    %517 = vmatprep.subr.mxu0 0.0
    %518 = vmatpush1.msra.mxu0 %v410
    %519 = vmatprep.subr.mxu0 0.0
    %520 = vmatpush1.msra.mxu0 %v411
    %521 = vmatprep.subr.mxu0 0.0
    %522 = vmatpush1.msra.mxu0 %v412
    %523 = vmatprep.subr.mxu0 0.0
    %524 = vmatpush1.msra.mxu0 %v413
    %525 = vmatprep.subr.mxu0 0.0
    %526 = vmatpush1.msra.mxu0 %v414
    %527 = vmatprep.subr.mxu0 0.0
    %528 = vmatpush1.msra.mxu0 %v415
    %529 = vmatprep.subr.mxu0 0.0
    %530 = vmatpush1.msra.mxu0 %v416
    %531 = vmatprep.subr.mxu0 0.0
    %532 = vmatpush1.msra.mxu0 %v417
    %533 = vmatprep.subr.mxu0 0.0
    %534 = vmatpush1.msra.mxu0 %v418
    %535 = vmatprep.subr.mxu0 0.0
    %536 = vmatpush1.msra.mxu0 %v419
    %537 = vmatprep.subr.mxu0 0.0
    %538 = vmatpush1.msra.mxu0 0.0
    %539 = vmatprep.subr.mxu0 0.0
    %540 = vmatpush1.msra.mxu0 0.0
    %541 = vmatprep.subr.mxu0 0.0
    %542 = vmatpush1.msra.mxu0 0.0
    %543 = vmatprep.subr.mxu0 0.0
    %544 = vmatpush1.msra.mxu0 0.0
    %545 = vmatprep.subr.mxu0 0.0
    %546 = vmatpush1.msra.mxu0 0.0
    %547 = vmatprep.subr.mxu0 0.0
    %548 = vmatpush1.msra.mxu0 0.0
    %549 = vmatprep.subr.mxu0 0.0
    %550 = vmatpush1.msra.mxu0 0.0
    %551 = vmatprep.subr.mxu0 0.0
    %552 = vmatpush1.msra.mxu0 0.0
    %553 = vmatprep.subr.mxu0 0.0
    %554 = vmatpush1.msra.mxu0 0.0
    %555 = vmatprep.subr.mxu0 0.0
    %556 = vmatpush1.msra.mxu0 0.0
    %557 = vmatprep.subr.mxu0 0.0
    %558 = vmatpush1.msra.mxu0 0.0
    %559 = vmatprep.subr.mxu0 0.0
    %560 = vmatpush1.msra.mxu0 0.0
    %561 = vmatprep.subr.mxu0 0.0
    %562 = vmatpush1.msra.mxu0 0.0
    %563 = vmatprep.subr.mxu0 0.0
    %564 = vmatpush1.msra.mxu0 0.0
    %565 = vmatprep.subr.mxu0 0.0
    %566 = vmatpush1.msra.mxu0 0.0
    %567 = vmatprep.subr.mxu0 0.0
    %568 = vmatpush1.msra.mxu0 0.0
    %569 = vmatprep.mubr.f32.mxu0 0.0
    %570 = vmatmul.mubr.f32.gmra.mrb[0].mxu0 %v117
    %v571 = vpop.f32.mrb[0].mxu0
    %v572 = vadd.f32 %v487, %v571
    %v573 = vpop.f32.mrb[0].mxu0
    %574 = vmatprep.mubr.f32.mxu0 0.0
    %575 = vmatmul.mubr.f32.gmra.mrb[0].mxu0 %v120
    %v576 = vpop.f32.mrb[0].mxu0
    %v577 = vadd.f32 %v492, %v576
    %v578 = vpop.f32.mrb[0].mxu0
    %579 = vmatprep.mubr.f32.mxu0 0.0
    %580 = vmatmul.mubr.f32.gmra.mrb[0].mxu0 %v123
    %v581 = vpop.f32.mrb[0].mxu0
    %v582 = vadd.f32 %v497, %v581
    %v583 = vpop.f32.mrb[0].mxu0
    %584 = vmatprep.mubr.f32.mxu0 0.0
    %585 = vmatmul.mubr.f32.gmra.mrb[0].mxu0 %v126
    %v586 = vpop.f32.mrb[0].mxu0
    %v587 = vadd.f32 %v502, %v586
    %v588 = vpop.f32.mrb[0].mxu0
    %589 = vdwg.mxu0
    %v590 = vrsqrt.pop %v572
    %v591 = vmul.f32 %v572, %v590
    %vm592 = vcmp.eq.f32.partialorder %v572, inf
    %v593 = vsel %vm592, %v572, %v591
    %vm594 = vcmp.eq.f32.partialorder %v572, 0.0
    %v595 = vand.u32 %v572, 2147483648
    %v596 = vsel %vm594, %v595, %v593
    %v597 = vrsqrt.pop %v577
    %v598 = vmul.f32 %v577, %v597
    %vm599 = vcmp.eq.f32.partialorder %v577, inf
    %v600 = vsel %vm599, %v577, %v598
    %vm601 = vcmp.eq.f32.partialorder %v577, 0.0
    %v602 = vand.u32 %v577, 2147483648
    %v603 = vsel %vm601, %v602, %v600
    %v604 = vrsqrt.pop %v582
    %v605 = vmul.f32 %v582, %v604
    %vm606 = vcmp.eq.f32.partialorder %v582, inf
    %v607 = vsel %vm606, %v582, %v605
    %vm608 = vcmp.eq.f32.partialorder %v582, 0.0
    %v609 = vand.u32 %v582, 2147483648
    %v610 = vsel %vm608, %v609, %v607
    %v611 = vrsqrt.pop %v587
    %v612 = vmul.f32 %v587, %v611
    %vm613 = vcmp.eq.f32.partialorder %v587, inf
    %v614 = vsel %vm613, %v587, %v612
    %vm615 = vcmp.eq.f32.partialorder %v587, 0.0
    %v616 = vand.u32 %v587, 2147483648
    %v617 = vsel %vm615, %v616, %v614
    %s618 = sadd.s32 0, 0
    %s619 = smul.u32 %s618, 32
    %v620 = vstv %s619
    %v621 = vadd.s32 %v620, %v128
    %v622 = vadd.s32 %v620, %v129
    %v623 = vadd.s32 %v620, %v130
    %v624 = vadd.s32 %v620, %v131
    %v625 = vmul.u32 %v621, 128
    %v626 = vmul.u32 %v622, 128
    %v627 = vmul.u32 %v623, 128
    %v628 = vmul.u32 %v624, 128
    %v629 = vadd.s32 %v625, %v177
    %v630 = vadd.s32 %v626, %v177
    %v631 = vadd.s32 %v627, %v177
    %v632 = vadd.s32 %v628, %v177
    %vm633 = vcmp.lt.s32.totalorder %v629, 50
    %vm634 = vcmp.lt.s32.totalorder %v630, 50
    %vm635 = vcmp.lt.s32.totalorder %v631, 50
    %vm636 = vcmp.lt.s32.totalorder %v632, 50
    %v637 = vsel %vm633, %v596, 0.0
    %v638 = vsel %vm634, %v603, 0.0
    %v639 = vsel %vm635, %v610, 0.0
    %v640 = vsel %vm636, %v617, 0.0
    %v641 = vld [vmem:[#allocation2] sm:$0x1]
    %v642 = vadd.f32 %v637, %v638
    %v643 = vadd.f32 %v642, %v639
    %v644 = vadd.f32 %v643, %v640
    %v645 = vrot.slane %v644, 4
    %v646 = vadd.f32 %v644, %v645
    %v647 = vrot.slane %v646, 2
    %v648 = vadd.f32 %v646, %v647
    %v649 = vrot.slane %v648, 1
    %v650 = vadd.f32 %v648, %v649
    %v651 = vadd.f32 %v641, %v650
    %652 = vst [vmem:[#allocation2] sm:$0x1] %v651
    // Predicated region
    $region22: #{tpu_custom_call.1} parent=1 // pred_check
      %p653 = pneg %p62
    $region23: #{tpu_custom_call.1} parent=1 // pred_check_branch
      %655 = sbr.rel (%p653) target = $region25
    $region24: #{tpu_custom_call.1} parent=1 // pred_region
      %v656 = vld [vmem:[#allocation2] sm:$0x1]
      %vm657 = vcmask 1040384
      %v658 = vsel %vm657, %v656, 0.0
      %659 = vadd.xlane.f32.xlu0 %v658
      %v660 = vpop.xlane.xlu0 %659
      %v661 = vrot.slane %v660, 4
      %v662 = vadd.f32 %v660, %v661
      %v663 = vrot.slane %v662, 2
      %v664 = vadd.f32 %v662, %v663
      %v665 = vrot.slane %v664, 1
      %v666 = vadd.f32 %v664, %v665
      %s667 = vtos %v666
      %v668 = vstv %s667
      %669 = vst [vmem:[#allocation8] sm:$0x1] %v668
    $region25: #{tpu_custom_call.1} parent=1 // pred_fallthru
      _
    // Predicated region
    $region26: #{tpu_custom_call.1} parent=1 // pred_check
      _
    $region27: #{tpu_custom_call.1} parent=1 // pred_check_branch
      %671 = sbr.rel (0) target = $region29
    $region28: #{tpu_custom_call.1} parent=1 // pred_region
      %s673 = ssub.s32 16, 16
      %674 = vsyncadd [#allocation5], %s673
      %s676 = sshll.u32 [#allocation8], 4
      %s677 = int_to_ptr.vmem [resolvable:$true] %s676
      %679 = dma.vmem_to_hbm [thread:$0]  %s677, 16, %s2, [#allocation5]
    $region29: #{tpu_custom_call.1} parent=1 // pred_fallthru
      _
    // Predicated region
    $region30: #{tpu_custom_call.1} parent=1 // pred_check
      _
    $region31: #{tpu_custom_call.1} parent=1 // pred_check_branch
      %681 = sbr.rel (0) target = $region33
    $region32: #{tpu_custom_call.1} parent=1 // pred_region
      %682 = dma.done [#allocation5], 16
    $region33: #{tpu_custom_call.1} parent=1 // pred_fallthru
      _
    %683 = vsyncpa [#allocation4], 1
    %684 = vsyncpa [#allocation7], 1
    %685 = vsyncpa [#allocation5], 1

</llo_original>
